<compile_context>
chip_gen: v7x
topology: tpu7x:2x2x1
jax: 0.10.0
libtpu: 0.0.40
codegen_flags: <defaults>
</compile_context>

<pallas_src>
from functools import partial

import jax
import jax.numpy as jnp
from jax import lax
from jax.experimental import pallas as pl
from jax.experimental.pallas import tpu as pltpu


def _round_up(x: int, m: int) -> int:
    return ((x + m - 1) // m) * m


def _vmem_capacity_bytes(default: int = 64 << 20) -> int:
    """Physical per-core VMEM (v5e/v6e: 128 MiB, v7x: 64 MiB per TC).

    Conservative 64 MiB default if the query is unavailable, so tile plans
    are always safe on v7x.
    """
    try:
        info = pltpu.get_tpu_info()
        cap = int(getattr(info, "vmem_capacity_bytes", 0) or 0)
        if cap > 0:
            return cap
    except Exception:
        pass
    return default


def _center_loss_kernel(labels_ref, pred_ref, center_ref, out_ref, *,
                        total_rows: int, mask_rows: bool):
    """One batch tile -> partial sum of squared distances.

    labels_ref: [1, 1, TB] int32 (VMEM, lane-dense; -1 on padded rows)
    pred_ref:   [TB, D]    native dtype (VMEM, full-extent feature dim)
    center_ref: [Cp, D]    native dtype (VMEM, same block every grid step)
    out_ref:    [1, 1]     f32 (SMEM), per-tile partial squared-sum
    """
    tile_rows = pred_ref.shape[0]
    cp = center_ref.shape[0]

    # Lane-dense one-hot: classes on sublanes, batch rows on lanes.
    labels = labels_ref[0]                                             # [1, TB]
    class_ids = lax.broadcasted_iota(jnp.int32, (cp, tile_rows), 0)    # [Cp, TB]
    onehot_t = (labels == class_ids).astype(center_ref.dtype)          # [Cp, TB]

    # Gather center rows via transposed one-hot matmul on the MXU.
    # Selection by 1.0 with f32 accumulation is exact (bf16 stays bf16).
    centers = lax.dot_general(
        onehot_t, center_ref[...],
        dimension_numbers=(((0,), (0,)), ((), ())),
        preferred_element_type=jnp.float32)                            # [TB, D]

    pred_f = pred_ref[...].astype(jnp.float32)
    if mask_rows:
        # The last tile's batch tail reads uninitialized VMEM; select it to
        # zero so (garbage - 0)^2 never reaches the sum (select is NaN-safe).
        row_ids = pl.program_id(0) * tile_rows + lax.broadcasted_iota(
            jnp.int32, pred_f.shape, 0)
        pred_f = jnp.where(row_ids < total_rows, pred_f, 0.0)

    diff = pred_f - centers
    out_ref[0, 0] = jnp.sum(diff * diff)


def center_loss(pred, labels, center):
    """pred: [B, D], labels: [B] int, center: [C, D] -> scalar f32 loss."""
    B, D = pred.shape
    C, Dc = center.shape
    assert Dc == D, (pred.shape, center.shape)

    pred_elem = jnp.dtype(pred.dtype).itemsize
    center_elem = jnp.dtype(center.dtype).itemsize

    # Lane-padded footprints as *resident in VMEM* (the data itself is NOT
    # padded: HBM traffic stays at the true byte counts).
    Dp_vmem = _round_up(D, 128)
    Cp = _round_up(C, 8)

    # --- Tile sizing: bytes-first, clamped to the chip's physical VMEM. ----
    vmem_cap = _vmem_capacity_bytes()
    tile_budget = max(8 << 20, int(vmem_cap * 0.55))
    center_resident = 2 * Cp * Dp_vmem * center_elem      # (double-buffered)
    # Per-batch-row VMEM: double-buffered pred tile + f32 temporaries
    # (gathered centers / diff / cast) + one-hot column + labels lane.
    per_row = Dp_vmem * (2 * pred_elem + 12) + 8 * Cp + 32
    tb_rows = max(8, ((tile_budget - center_resident) // per_row // 8) * 8)
    # Cap a single pred tile at ~16 MiB (diminishing returns beyond that).
    tb_rows = min(tb_rows,
                  max(8, ((16 << 20) // (Dp_vmem * pred_elem) // 8) * 8))

    TB = max(8, min(_round_up(B, 8), tb_rows))
    if B >= 16:
        # Keep >= 2 grid steps so v7x's two TensorCores both get work.
        TB = min(TB, _round_up((B + 1) // 2, 8))
    num_tiles = (B + TB - 1) // TB
    Bp = num_tiles * TB
    mask_rows = (Bp != B)

    # Labels: tiny, lane-dense [num_tiles, 1, TB]; padded rows get label -1
    # (all-zero one-hot column -> zero gathered center).
    labels_p = (jnp.full((Bp,), -1, jnp.int32)
                .at[:B].set(labels.astype(jnp.int32))
                .reshape(num_tiles, 1, TB))

    # Centers: pad class count to a sublane multiple (zero rows, tiny cost).
    if Cp == C:
        center_p = center
    else:
        center_p = jnp.zeros((Cp, D), center.dtype).at[:C].set(center)

    # Scoped-VMEM limit: generous but always below physical capacity
    # (v7x: 64 MiB per TC; v5e/v6e: 128 MiB).
    vmem_limit = int(min(int(vmem_cap * 0.85), vmem_cap - (4 << 20)))
    vmem_limit = max(vmem_limit, 16 << 20)

    kernel = partial(_center_loss_kernel, total_rows=B, mask_rows=mask_rows)

    partials = pl.pallas_call(
        kernel,
        out_shape=jax.ShapeDtypeStruct((num_tiles, 1), jnp.float32),
        grid=(num_tiles,),
        in_specs=[
            pl.BlockSpec((1, 1, TB), lambda i: (i, 0, 0)),   # labels (lane-dense)
            pl.BlockSpec((TB, D), lambda i: (i, 0)),         # pred (no padding)
            pl.BlockSpec((Cp, D), lambda i: (0, 0)),         # center (resident)
        ],
        out_specs=pl.BlockSpec((1, 1), lambda i: (i, 0),
                               memory_space=pltpu.SMEM),
        compiler_params=pltpu.CompilerParams(
            dimension_semantics=("parallel",),
            vmem_limit_bytes=vmem_limit,
        ),
    )(labels_p, pred, center_p)

    # Sum per-tile partials, then apply 1/(2B) with the TRUE batch size.
    return jnp.sum(partials) / (2.0 * jnp.float32(B))


if __name__ == "__main__":
    num_classes = 10
    feat_dim = 2
    batch = 8

    key = jax.random.PRNGKey(0)
    k_center, k_pred, k_labels = jax.random.split(key, 3)

    # Deterministic "parameter" init (matches torch.randn shape semantics).
    center = jax.random.normal(k_center, (num_classes, feat_dim), jnp.float32)
    pred = jax.random.normal(k_pred, (batch, feat_dim), jnp.float32)
    labels = jax.random.randint(k_labels, (batch,), 0, num_classes, jnp.int32)

    loss = jax.block_until_ready(center_loss(pred, labels, center))
    ref = jnp.sum((pred - center[labels]) ** 2) / batch / 2.0
    assert jnp.allclose(loss, ref, rtol=1e-5, atol=1e-5), (loss, ref)

    # Second check: ragged batch + multi-tile grid (exercises the in-kernel
    # tail masking and the megacore-friendly >= 2-step grid).
    b2, d2 = 40, 33
    k2a, k2b, k2c = jax.random.split(jax.random.PRNGKey(1), 3)
    center2 = jax.random.normal(k2a, (num_classes, d2), jnp.float32)
    pred2 = jax.random.normal(k2b, (b2, d2), jnp.float32)
    labels2 = jax.random.randint(k2c, (b2,), 0, num_classes, jnp.int32)
    loss2 = jax.block_until_ready(center_loss(pred2, labels2, center2))
    ref2 = jnp.sum((pred2 - center2[labels2]) ** 2) / b2 / 2.0
    assert jnp.allclose(loss2, ref2, rtol=1e-5, atol=1e-5), (loss2, ref2)

    print("KERNEL_OK")
</pallas_src>

<mosaic_0001>
module attributes {stable_mosaic.version = 11 : i64} {
  func.func @_center_loss_kernel(%arg0: i32, %arg1: memref<1x1x8xi32, #tpu.memory_space<vmem>>, %arg2: memref<8x2xf32, #tpu.memory_space<vmem>>, %arg3: memref<16x2xf32, #tpu.memory_space<vmem>>, %arg4: memref<1x1xf32, #tpu.memory_space<smem>>) attributes {dimension_semantics = [#tpu.dimension_semantics<parallel>], iteration_bounds = array<i64: 1>, scalar_prefetch = 0 : i64, scratch_operands = 0 : i64, tpu.core_type = #tpu.core_type<tc>, window_params = [{transform_indices = @transform_0, window_bounds = array<i64: 1, 1, 8>}, {transform_indices = @transform_1, window_bounds = array<i64: 8, 2>}, {pipeline_mode = #tpu.pipeline_mode<synchronous>, transform_indices = @transform_2, window_bounds = array<i64: 16, 2>}, {transform_indices = @transform_3, window_bounds = array<i64: 1, 1>}]} {
    %c0 = arith.constant 0 : index
    %c0_0 = arith.constant 0 : index
    %c0_1 = arith.constant 0 : index
    %0 = vector.load %arg1[%c0, %c0_0, %c0_1] : memref<1x1x8xi32, #tpu.memory_space<vmem>>, vector<1x1x8xi32>
    %1 = vector.shape_cast %0 : vector<1x1x8xi32> to vector<1x8xi32>
    %2 = tpu.iota {dimensions = array<i32: 0>} : vector<16x8xi32>
    %3 = vector.broadcast %1 : vector<1x8xi32> to vector<16x8xi32>
    %4 = arith.cmpi eq, %3, %2 : vector<16x8xi32>
    %5 = arith.extui %4 : vector<16x8xi1> to vector<16x8xi32>
    %6 = arith.sitofp %5 : vector<16x8xi32> to vector<16x8xf32>
    %c0_2 = arith.constant 0 : index
    %c0_3 = arith.constant 0 : index
    %7 = vector.load %arg3[%c0_2, %c0_3] : memref<16x2xf32, #tpu.memory_space<vmem>>, vector<16x2xf32>
    %cst = arith.constant dense<0.000000e+00> : vector<8x2xf32>
    %8 = tpu.matmul %6, %7, %cst {dimension_numbers = #tpu.dot_dimension_numbers<[0], [0], [1], [1], [0, 1, 1, 1], [], []>} : vector<16x8xf32>, vector<16x2xf32>, vector<8x2xf32> -> vector<8x2xf32>
    %c0_4 = arith.constant 0 : index
    %c0_5 = arith.constant 0 : index
    %9 = vector.load %arg2[%c0_4, %c0_5] : memref<8x2xf32, #tpu.memory_space<vmem>>, vector<8x2xf32>
    %10 = arith.subf %9, %8 : vector<8x2xf32>
    %11 = arith.mulf %10, %10 : vector<8x2xf32>
    %12 = vector.shape_cast %11 : vector<8x2xf32> to vector<1x8x2xf32>
    %cst_6 = arith.constant dense<0.000000e+00> : vector<1xf32>
    %13 = vector.multi_reduction <add>, %12, %cst_6 [1, 2] : vector<1x8x2xf32> to vector<1xf32>
    %14 = vector.shape_cast %13 : vector<1xf32> to vector<1x1x1xf32>
    %15 = vector.extract %14[0, 0, 0] : f32 from vector<1x1x1xf32>
    %c0_7 = arith.constant 0 : index
    %c0_8 = arith.constant 0 : index
    %16 = memref.load %arg4[%c0_7, %c0_8] : memref<1x1xf32, #tpu.memory_space<smem>>
    memref.store %15, %arg4[%c0_7, %c0_8] : memref<1x1xf32, #tpu.memory_space<smem>>
    return
  }
  func.func @transform_0(%arg0: i32) -> (i32, i32, i32) {
    %c0_i32 = arith.constant 0 : i32
    %c0_i32_0 = arith.constant 0 : i32
    %c0_i32_1 = arith.constant 0 : i32
    return %arg0, %c0_i32, %c0_i32_0 : i32, i32, i32
  }
  func.func @transform_1(%arg0: i32) -> (i32, i32) {
    %c0_i32 = arith.constant 0 : i32
    %c0_i32_0 = arith.constant 0 : i32
    return %arg0, %c0_i32 : i32, i32
  }
  func.func @transform_2(%arg0: i32) -> (i32, i32) {
    %c0_i32 = arith.constant 0 : i32
    %c0_i32_0 = arith.constant 0 : i32
    %c0_i32_1 = arith.constant 0 : i32
    return %c0_i32, %c0_i32_0 : i32, i32
  }
  func.func @transform_3(%arg0: i32) -> (i32, i32) {
    %c0_i32 = arith.constant 0 : i32
    %c0_i32_0 = arith.constant 0 : i32
    return %arg0, %c0_i32 : i32, i32
  }
}

</mosaic_0001>

<llo_original>
// kernel: tpu_custom_call.1
$region0: #{tpu_custom_call.1}
  #allocation0 [shape = 'u32[]', space=smem, size = 0x4, offset = 0x4, fixed_abs, tag = 'smem constant byte address 0x4 - core index']
  #allocation1 [shape = 'u32[144,128]{1,0:T(1,128)}', space=vmem, size = 0x12000, scoped, tag = 'internal scratch']
  %s0 = inlined_call_operand.vmem [shape: s32[1,1,8], index: 0, kind: input, shape index: {}]
  %s1 = inlined_call_operand.vmem [shape: f32[8,2], index: 1, kind: input, shape index: {}]
  %s2 = inlined_call_operand.vmem [shape: f32[16,2], index: 2, kind: input, shape index: {}]
  %s3 = inlined_call_operand.hbm [shape: f32[1,1], index: 3, kind: output, shape index: {}]
  %s4 = sld [smem:[#allocation0]]
  $region22: #{tpu_custom_call.1} parent=0
    _
  %s6 = ssub.s32 1, %s4
  %s7 = scalar_select 0, %s6, %s4
  $region1: #{tpu_custom_call.1} parent=0
    #allocation2 [shape = 'u8[512]{0}', space=smem, size = 0x200, scoped, tag = 'output window, operand 0, single buffered']
    #allocation3 [shape = 's32[1]{0}', space=sflag, size = 0x4, scoped, tag = 'scoped memory for tpu_custom_call.1']
    %8 = vsyncpa [#allocation3], 0
    // Predicated region
    $region2: #{tpu_custom_call.1} parent=1 // pred_check
      _
    $region3: #{tpu_custom_call.1} parent=1 // pred_check_branch
      %10 = sbr.rel (0) target = $region5
    $region4: #{tpu_custom_call.1} parent=1 // pred_region
      _
    $region5: #{tpu_custom_call.1} parent=1 // pred_fallthru
      _
    // Predicated region
    $region6: #{tpu_custom_call.1} parent=1 // pred_check
      _
    $region7: #{tpu_custom_call.1} parent=1 // pred_check_branch
      %12 = sbr.rel (0) target = $region9
    $region8: #{tpu_custom_call.1} parent=1 // pred_region
      _
    $region9: #{tpu_custom_call.1} parent=1 // pred_fallthru
      _
    // Predicated region
    $region10: #{tpu_custom_call.1} parent=1 // pred_check
      _
    $region11: #{tpu_custom_call.1} parent=1 // pred_check_branch
      %14 = sbr.rel (0) target = $region13
    $region12: #{tpu_custom_call.1} parent=1 // pred_region
      _
    $region13: #{tpu_custom_call.1} parent=1 // pred_fallthru
      _
    %v15 = vld [vmem:[%s0] sm:$0x1]
    %v16 = vlaneseq
    %v17 = vshrl.u32 %v16, 7
    %v18 = vadd.s32 %v17, 8
    %v19 = vlaneseq
    %v20 = vshrl.u32 %v19, 7
    %v21 = vsub.s32 0, %v20
    %v22 = vrot.slane %v15, %v21
    %vm23 = vcmp.eq.s32.totalorder %v22, %v17
    %vm24 = vcmp.eq.s32.totalorder %v22, %v18
    %v25 = vsel %vm23, 1, 0
    %v26 = vsel %vm24, 1, 0
    %v27 = vcvt.s32.f32 %v25
    %v28 = vcvt.s32.f32 %v26
    %v29 = vld [vmem:[%s2] sm:$0xff]
    %v30 = vld [vmem:[%s2 + $0x8] sm:$0xff]
    %31 = vxpose.xlu0.b32.start [1/16] %v27, 128
    %32 = vxpose.xlu0.b32.cont [2/16] %v28, 128
    %33 = vxpose.xlu0.b32.cont [3/16] 0.0, 128
    %34 = vxpose.xlu0.b32.cont [4/16] 0.0, 128
    %35 = vxpose.xlu0.b32.cont [5/16] 0.0, 128
    %36 = vxpose.xlu0.b32.cont [6/16] 0.0, 128
    %37 = vxpose.xlu0.b32.cont [7/16] 0.0, 128
    %38 = vxpose.xlu0.b32.cont [8/16] 0.0, 128
    %39 = vxpose.xlu0.b32.cont [9/16] 0.0, 128
    %40 = vxpose.xlu0.b32.cont [10/16] 0.0, 128
    %41 = vxpose.xlu0.b32.cont [11/16] 0.0, 128
    %42 = vxpose.xlu0.b32.cont [12/16] 0.0, 128
    %43 = vxpose.xlu0.b32.cont [13/16] 0.0, 128
    %44 = vxpose.xlu0.b32.cont [14/16] 0.0, 128
    %45 = vxpose.xlu0.b32.cont [15/16] 0.0, 128
    %46 = vxpose.xlu0.b32.end [16/16] 0.0, 128
    %v47 = vpop.trf.xlu0
    %v48 = vpop.trf.xlu0
    %v49 = vpop.trf.xlu0
    %v50 = vpop.trf.xlu0
    %v51 = vpop.trf.xlu0
    %v52 = vpop.trf.xlu0
    %v53 = vpop.trf.xlu0
    %v54 = vpop.trf.xlu0
    %v55 = vpop.trf.xlu0
    %v56 = vpop.trf.xlu0
    %v57 = vpop.trf.xlu0
    %v58 = vpop.trf.xlu0
    %v59 = vpop.trf.xlu0
    %v60 = vpop.trf.xlu0
    %v61 = vpop.trf.xlu0
    %v62 = vpop.trf.xlu0
    %vm63 = vcmask 130048
    %v65 = vsel %vm63, %v47, 0
    %67 = vmatprep.subr.mxu0 0.0
    %68 = vmatpush1.msra.mxu0 %v29
    %69 = vmatprep.subr.mxu0 0.0
    %70 = vmatpush1.msra.mxu0 %v30
    %71 = vmatprep.subr.mxu0 0.0
    %72 = vmatpush1.msra.mxu0 0.0
    %73 = vmatprep.subr.mxu0 0.0
    %74 = vmatpush1.msra.mxu0 0.0
    %75 = vmatprep.subr.mxu0 0.0
    %76 = vmatpush1.msra.mxu0 0.0
    %77 = vmatprep.subr.mxu0 0.0
    %78 = vmatpush1.msra.mxu0 0.0
    %79 = vmatprep.subr.mxu0 0.0
    %80 = vmatpush1.msra.mxu0 0.0
    %81 = vmatprep.subr.mxu0 0.0
    %82 = vmatpush1.msra.mxu0 0.0
    %83 = vmatprep.subr.mxu0 0.0
    %84 = vmatpush1.msra.mxu0 0.0
    %85 = vmatprep.subr.mxu0 0.0
    %86 = vmatpush1.msra.mxu0 0.0
    %87 = vmatprep.subr.mxu0 0.0
    %88 = vmatpush1.msra.mxu0 0.0
    %89 = vmatprep.subr.mxu0 0.0
    %90 = vmatpush1.msra.mxu0 0.0
    %91 = vmatprep.subr.mxu0 0.0
    %92 = vmatpush1.msra.mxu0 0.0
    %93 = vmatprep.subr.mxu0 0.0
    %94 = vmatpush1.msra.mxu0 0.0
    %95 = vmatprep.subr.mxu0 0.0
    %96 = vmatpush1.msra.mxu0 0.0
    %97 = vmatprep.subr.mxu0 0.0
    %98 = vmatpush1.msra.mxu0 0.0
    %99 = vmatprep.subr.mxu0 0.0
    %100 = vmatpush1.msra.mxu0 0.0
    %101 = vmatprep.subr.mxu0 0.0
    %102 = vmatpush1.msra.mxu0 0.0
    %103 = vmatprep.subr.mxu0 0.0
    %104 = vmatpush1.msra.mxu0 0.0
    %105 = vmatprep.subr.mxu0 0.0
    %106 = vmatpush1.msra.mxu0 0.0
    %107 = vmatprep.subr.mxu0 0.0
    %108 = vmatpush1.msra.mxu0 0.0
    %109 = vmatprep.subr.mxu0 0.0
    %110 = vmatpush1.msra.mxu0 0.0
    %111 = vmatprep.subr.mxu0 0.0
    %112 = vmatpush1.msra.mxu0 0.0
    %113 = vmatprep.subr.mxu0 0.0
    %114 = vmatpush1.msra.mxu0 0.0
    %115 = vmatprep.subr.mxu0 0.0
    %116 = vmatpush1.msra.mxu0 0.0
    %117 = vmatprep.subr.mxu0 0.0
    %118 = vmatpush1.msra.mxu0 0.0
    %119 = vmatprep.subr.mxu0 0.0
    %120 = vmatpush1.msra.mxu0 0.0
    %121 = vmatprep.subr.mxu0 0.0
    %122 = vmatpush1.msra.mxu0 0.0
    %123 = vmatprep.subr.mxu0 0.0
    %124 = vmatpush1.msra.mxu0 0.0
    %125 = vmatprep.subr.mxu0 0.0
    %126 = vmatpush1.msra.mxu0 0.0
    %127 = vmatprep.subr.mxu0 0.0
    %128 = vmatpush1.msra.mxu0 0.0
    %129 = vmatprep.subr.mxu0 0.0
    %130 = vmatpush1.msra.mxu0 0.0
    %131 = vmatprep.mubr.f32.mxu0 0.0
    %132 = vmatmul.mubr.f32.gmra.mrb[0].mxu0 %v65
    %v133 = vpop.f32.mrb[0].mxu0
    %v134 = vadd.f32 0.0, %v133
    %v135 = vpop.f32.mrb[0].mxu0
    %136 = vdwg.mxu0
    %v137 = vld [vmem:[%s1] sm:$0xff]
    %v138 = vsub.f32 %v137, %v134
    %v139 = vmul.f32 %v138, %v138
    %vm140 = vcmask 15360
    %v141 = vsel %vm140, %v139, 0.0
    %142 = vadd.xlane.f32.xlu0 %v141
    %v143 = vpop.xlane.xlu0 %142
    %v144 = vrot.slane %v143, 4
    %v145 = vadd.f32 %v143, %v144
    %v146 = vrot.slane %v145, 2
    %v147 = vadd.f32 %v145, %v146
    %v148 = vrot.slane %v147, 1
    %v149 = vadd.f32 %v147, %v148
    %s150 = vtos %v149
    %s151 = scalar_lea.smem [#allocation2], 0
    %152 = sst [smem:[%s151]] %s150
    // Predicated region
    $region14: #{tpu_custom_call.1} parent=1 // pred_check
      _
    $region15: #{tpu_custom_call.1} parent=1 // pred_check_branch
      %154 = sbr.rel (0) target = $region17
    $region16: #{tpu_custom_call.1} parent=1 // pred_region
      %s156 = ssub.s32 16, 16
      %157 = vsyncadd [#allocation3], %s156
      %160 = dma.smem_to_hbm [#allocation2], 16, %s3, [#allocation3]
    $region17: #{tpu_custom_call.1} parent=1 // pred_fallthru
      _
    // Predicated region
    $region18: #{tpu_custom_call.1} parent=1 // pred_check
      _
    $region19: #{tpu_custom_call.1} parent=1 // pred_check_branch
      %162 = sbr.rel (0) target = $region21
    $region20: #{tpu_custom_call.1} parent=1 // pred_region
      %163 = dma.done [#allocation3], 16
    $region21: #{tpu_custom_call.1} parent=1 // pred_fallthru
      _
    %164 = sfence
    %165 = vsyncpa [#allocation3], 1

</llo_original>
